<compile_context>
chip_gen: v5e
topology: v5e:2x2
jax: 0.10.0
libtpu: 0.0.40
codegen_flags: <defaults>
</compile_context>

<pallas_src>
import functools

import jax
import jax.numpy as jnp
from jax.experimental import pallas as pl
from jax.experimental.pallas import tpu as pltpu


def find_multiple(n: int, k: int) -> int:
    if n % k == 0:
        return n
    return n + k - n % k


def _pick_tile_h(H: int, th_max: int) -> int:
    """Largest multiple-of-128 divisor of H that is <= th_max (or H itself)."""
    if H <= th_max:
        return H
    for th in range(th_max, 127, -128):
        if H % th == 0:
            return th
    return H  # fall back to full H (must then fit in VMEM)


def ffn_kernel(x_ref, w1_ref, w3_ref, w2_ref, o_ref, acc_ref):
    # x_ref:  (tm, D)   bf16 row tile of the flattened input
    # w1_ref: (th, D)   bf16 slab of w1 (PyTorch (out, in) layout)
    # w3_ref: (th, D)   bf16 slab of w3
    # w2_ref: (D, th)   bf16 slab of w2
    # o_ref:  (tm, D)   output tile (written on last H step)
    # acc_ref:(tm, D)   f32 accumulator scratch (resident across H steps)
    h_idx = pl.program_id(1)

    @pl.when(h_idx == 0)
    def _():
        acc_ref[...] = jnp.zeros_like(acc_ref)

    x = x_ref[...]
    dn = (((1,), (1,)), ((), ()))  # contract last dim of both operands (no transpose)

    # gate / up projections: (tm, D) x (th, D) -> (tm, th), f32 accumulation on MXU
    h1 = jax.lax.dot_general(x, w1_ref[...], dn, preferred_element_type=jnp.float32)
    h3 = jax.lax.dot_general(x, w3_ref[...], dn, preferred_element_type=jnp.float32)

    # SwiGLU in f32: silu(h1) * h3
    h = (h1 * jax.nn.sigmoid(h1)) * h3

    # down-projection partial: (tm, th) x (D, th) -> (tm, D), accumulated in f32
    acc_ref[...] += jax.lax.dot_general(
        h.astype(w2_ref.dtype), w2_ref[...], dn,
        preferred_element_type=jnp.float32)

    @pl.when(h_idx == pl.num_programs(1) - 1)
    def _():
        o_ref[...] = acc_ref[...].astype(o_ref.dtype)


@functools.partial(jax.jit, static_argnames=("tm_max", "th_max"))
def feed_forward(x, w1, w3, w2, *, tm_max=256, th_max=512):
    """x: (B, S, D).  w1, w3: (H, D) PyTorch layout.  w2: (D, H) PyTorch layout."""
    B, S, D = x.shape
    H = w1.shape[0]
    M = B * S

    tm = min(tm_max, find_multiple(M, 16))   # large M tile; shrink for tiny M
    Mp = find_multiple(M, tm)                # pad M instead of hard-asserting
    th = _pick_tile_h(H, th_max)             # hidden-dim tile (weight residency cap)

    x2d = x.reshape(M, D)
    if Mp != M:
        x2d = jnp.pad(x2d, ((0, Mp - M), (0, 0)))

    # bf16 operands, f32 accumulation.  (In a real model the weights would be
    # stored in bf16 once rather than cast per call.)
    xb = x2d.astype(jnp.bfloat16)
    w1b = w1.astype(jnp.bfloat16)
    w3b = w3.astype(jnp.bfloat16)
    w2b = w2.astype(jnp.bfloat16)

    grid = (Mp // tm, H // th)
    cost = pl.CostEstimate(
        flops=6 * Mp * D * H,                      # three M*D*H matmuls
        transcendentals=Mp * H,                    # sigmoid
        bytes_accessed=(Mp * D * 2                 # x (bf16)
                        + 3 * D * H * 2 * grid[0]  # weights re-read per M tile (bf16)
                        + Mp * D * x.dtype.itemsize),
    )

    out2d = pl.pallas_call(
        ffn_kernel,
        out_shape=jax.ShapeDtypeStruct((Mp, D), x.dtype),
        grid_spec=pltpu.PrefetchScalarGridSpec(
            num_scalar_prefetch=0,
            grid=grid,
            in_specs=[
                pl.BlockSpec((tm, D), lambda i, h: (i, 0)),   # x rows
                pl.BlockSpec((th, D), lambda i, h: (h, 0)),   # w1 slab
                pl.BlockSpec((th, D), lambda i, h: (h, 0)),   # w3 slab
                pl.BlockSpec((D, th), lambda i, h: (0, h)),   # w2 slab
            ],
            out_specs=pl.BlockSpec((tm, D), lambda i, h: (i, 0)),
            scratch_shapes=[pltpu.VMEM((tm, D), jnp.float32)],
        ),
        compiler_params=pltpu.CompilerParams(
            dimension_semantics=("parallel", "arbitrary")),
        cost_estimate=cost,
    )(xb, w1b, w3b, w2b)

    return out2d[:M].reshape(B, S, D)


def reference_ffn(x, w1, w3, w2):
    h1 = jnp.einsum("bsd,hd->bsh", x, w1)
    h3 = jnp.einsum("bsd,hd->bsh", x, w3)
    h = (h1 * jax.nn.sigmoid(h1)) * h3
    return jnp.einsum("bsh,dh->bsd", h, w2)


if __name__ == "__main__":
    # Small ModelArgs-consistent config:
    #   dim=128, multiple_of=256, ffn_dim_multiplier=None
    #   hidden = 4*128 = 512 -> int(2*512/3) = 341 -> find_multiple(341, 256) = 512
    dim = 128
    multiple_of = 256
    hidden_dim = 4 * dim
    hidden_dim = int(2 * hidden_dim / 3)
    hidden_dim = find_multiple(hidden_dim, multiple_of)  # 512

    B, S = 2, 8

    key = jax.random.PRNGKey(0)
    kx, k1, k3, k2 = jax.random.split(key, 4)
    initializer_range = 0.02
    x = jax.random.normal(kx, (B, S, dim), dtype=jnp.float32)
    # PyTorch nn.Linear weight layout: (out_features, in_features)
    w1 = initializer_range * jax.random.normal(k1, (hidden_dim, dim), dtype=jnp.float32)
    w3 = initializer_range * jax.random.normal(k3, (hidden_dim, dim), dtype=jnp.float32)
    w2 = initializer_range * jax.random.normal(k2, (dim, hidden_dim), dtype=jnp.float32)

    out = feed_forward(x, w1, w3, w2)
    out = jax.block_until_ready(out)

    ref = reference_ffn(x, w1, w3, w2)
    assert out.shape == (B, S, dim)
    # bf16 matmul operands -> looser tolerance than a pure-f32 comparison
    assert jnp.allclose(out, ref, atol=5e-3, rtol=5e-2), "mismatch vs reference"

    # Also exercise the M-padding path (B*S not a multiple of the row tile).
    x_odd = jax.random.normal(kx, (3, 5, dim), dtype=jnp.float32)
    out_odd = jax.block_until_ready(feed_forward(x_odd, w1, w3, w2))
    ref_odd = reference_ffn(x_odd, w1, w3, w2)
    assert out_odd.shape == (3, 5, dim)
    assert jnp.allclose(out_odd, ref_odd, atol=5e-3, rtol=5e-2), "mismatch (padded M)"

    print("KERNEL_OK")
</pallas_src>

<mosaic_0001>
module attributes {stable_mosaic.version = 11 : i64} {
  func.func @ffn_kernel(%arg0: i32, %arg1: i32, %arg2: memref<16x128xbf16, #tpu.memory_space<vmem>>, %arg3: memref<512x128xbf16, #tpu.memory_space<vmem>>, %arg4: memref<512x128xbf16, #tpu.memory_space<vmem>>, %arg5: memref<128x512xbf16, #tpu.memory_space<vmem>>, %arg6: memref<16x128xf32, #tpu.memory_space<vmem>>, %arg7: memref<16x128xf32, #tpu.memory_space<vmem>>) attributes {dimension_semantics = [#tpu.dimension_semantics<parallel>, #tpu.dimension_semantics<arbitrary>], iteration_bounds = array<i64: 1, 1>, scalar_prefetch = 0 : i64, scratch_operands = 1 : i64, tpu.core_type = #tpu.core_type<tc>, window_params = [{transform_indices = @transform_0, window_bounds = array<i64: 16, 128>}, {transform_indices = @transform_1, window_bounds = array<i64: 512, 128>}, {transform_indices = @transform_2, window_bounds = array<i64: 512, 128>}, {transform_indices = @transform_3, window_bounds = array<i64: 128, 512>}, {transform_indices = @transform_4, window_bounds = array<i64: 16, 128>}]} {
    %c0_i32 = arith.constant 0 : i32
    %0 = arith.cmpi eq, %arg1, %c0_i32 : i32
    %1 = arith.extui %0 : i1 to i32
    %c0_i32_0 = arith.constant 0 : i32
    %2 = arith.cmpi ne, %1, %c0_i32_0 : i32
    scf.if %2 {
      %cst_17 = arith.constant 0.000000e+00 : f32
      %24 = vector.broadcast %cst_17 : f32 to vector<16x128xf32>
      %c0_18 = arith.constant 0 : index
      %c0_19 = arith.constant 0 : index
      %25 = vector.load %arg7[%c0_18, %c0_19] : memref<16x128xf32, #tpu.memory_space<vmem>>, vector<16x128xf32>
      tpu.vector_store %arg7[%c0_18, %c0_19], %24 {strides = array<i32>} : memref<16x128xf32, #tpu.memory_space<vmem>>, vector<16x128xf32>,
    } else {
    }
    %c0 = arith.constant 0 : index
    %c0_1 = arith.constant 0 : index
    %3 = vector.load %arg2[%c0, %c0_1] : memref<16x128xbf16, #tpu.memory_space<vmem>>, vector<16x128xbf16>
    %c0_2 = arith.constant 0 : index
    %c0_3 = arith.constant 0 : index
    %4 = vector.load %arg3[%c0_2, %c0_3] : memref<512x128xbf16, #tpu.memory_space<vmem>>, vector<512x128xbf16>
    %cst = arith.constant dense<0.000000e+00> : vector<16x512xf32>
    %5 = tpu.matmul %3, %4, %cst {dimension_numbers = #tpu.dot_dimension_numbers<[1], [1], [0], [0], [0, 0, 1, 0], [], []>} : vector<16x128xbf16>, vector<512x128xbf16>, vector<16x512xf32> -> vector<16x512xf32>
    %c0_4 = arith.constant 0 : index
    %c0_5 = arith.constant 0 : index
    %6 = vector.load %arg4[%c0_4, %c0_5] : memref<512x128xbf16, #tpu.memory_space<vmem>>, vector<512x128xbf16>
    %cst_6 = arith.constant dense<0.000000e+00> : vector<16x512xf32>
    %7 = tpu.matmul %3, %6, %cst_6 {dimension_numbers = #tpu.dot_dimension_numbers<[1], [1], [0], [0], [0, 0, 1, 0], [], []>} : vector<16x128xbf16>, vector<512x128xbf16>, vector<16x512xf32> -> vector<16x512xf32>
    %8 = arith.negf %5 : vector<16x512xf32>
    %9 = math.exp %8 : vector<16x512xf32>
    %cst_7 = arith.constant 1.000000e+00 : f32
    %10 = vector.broadcast %cst_7 : f32 to vector<16x512xf32>
    %11 = arith.addf %10, %9 : vector<16x512xf32>
    %12 = arith.divf %10, %11 : vector<16x512xf32>
    %13 = arith.mulf %5, %12 : vector<16x512xf32>
    %14 = arith.mulf %13, %7 : vector<16x512xf32>
    %c0_8 = arith.constant 0 : index
    %c0_9 = arith.constant 0 : index
    %15 = vector.load %arg7[%c0_8, %c0_9] : memref<16x128xf32, #tpu.memory_space<vmem>>, vector<16x128xf32>
    %16 = arith.truncf %14 : vector<16x512xf32> to vector<16x512xbf16>
    %c0_10 = arith.constant 0 : index
    %c0_11 = arith.constant 0 : index
    %17 = vector.load %arg5[%c0_10, %c0_11] : memref<128x512xbf16, #tpu.memory_space<vmem>>, vector<128x512xbf16>
    %cst_12 = arith.constant dense<0.000000e+00> : vector<16x128xf32>
    %18 = tpu.matmul %16, %17, %cst_12 {dimension_numbers = #tpu.dot_dimension_numbers<[1], [1], [0], [0], [0, 0, 1, 0], [], []>} : vector<16x512xbf16>, vector<128x512xbf16>, vector<16x128xf32> -> vector<16x128xf32>
    %19 = arith.addf %15, %18 : vector<16x128xf32>
    %c0_13 = arith.constant 0 : index
    %c0_14 = arith.constant 0 : index
    %20 = vector.load %arg7[%c0_13, %c0_14] : memref<16x128xf32, #tpu.memory_space<vmem>>, vector<16x128xf32>
    tpu.vector_store %arg7[%c0_13, %c0_14], %19 {strides = array<i32>} : memref<16x128xf32, #tpu.memory_space<vmem>>, vector<16x128xf32>,
    %c0_i32_15 = arith.constant 0 : i32
    %21 = arith.cmpi eq, %arg1, %c0_i32_15 : i32
    %22 = arith.extui %21 : i1 to i32
    %c0_i32_16 = arith.constant 0 : i32
    %23 = arith.cmpi ne, %22, %c0_i32_16 : i32
    scf.if %23 {
      %c0_17 = arith.constant 0 : index
      %c0_18 = arith.constant 0 : index
      %24 = vector.load %arg7[%c0_17, %c0_18] : memref<16x128xf32, #tpu.memory_space<vmem>>, vector<16x128xf32>
      %c0_19 = arith.constant 0 : index
      %c0_20 = arith.constant 0 : index
      %25 = vector.load %arg6[%c0_19, %c0_20] : memref<16x128xf32, #tpu.memory_space<vmem>>, vector<16x128xf32>
      tpu.vector_store %arg6[%c0_19, %c0_20], %24 {strides = array<i32>} : memref<16x128xf32, #tpu.memory_space<vmem>>, vector<16x128xf32>,
    } else {
    }
    return
  }
  func.func @transform_0(%arg0: i32, %arg1: i32) -> (i32, i32) {
    %c0_i32 = arith.constant 0 : i32
    %c0_i32_0 = arith.constant 0 : i32
    return %arg0, %c0_i32 : i32, i32
  }
  func.func @transform_1(%arg0: i32, %arg1: i32) -> (i32, i32) {
    %c0_i32 = arith.constant 0 : i32
    %c0_i32_0 = arith.constant 0 : i32
    return %arg1, %c0_i32 : i32, i32
  }
  func.func @transform_2(%arg0: i32, %arg1: i32) -> (i32, i32) {
    %c0_i32 = arith.constant 0 : i32
    %c0_i32_0 = arith.constant 0 : i32
    return %arg1, %c0_i32 : i32, i32
  }
  func.func @transform_3(%arg0: i32, %arg1: i32) -> (i32, i32) {
    %c0_i32 = arith.constant 0 : i32
    %c0_i32_0 = arith.constant 0 : i32
    return %c0_i32, %arg1 : i32, i32
  }
  func.func @transform_4(%arg0: i32, %arg1: i32) -> (i32, i32) {
    %c0_i32 = arith.constant 0 : i32
    %c0_i32_0 = arith.constant 0 : i32
    return %arg0, %c0_i32 : i32, i32
  }
}

</mosaic_0001>

<llo_original>
// kernel: feed_forward.1
$region0: #{feed_forward.1}
  #allocation0 [shape = 'u32[]', space=smem, size = 0x4, offset = 0x4, fixed_abs, tag = 'smem constant byte address 0x4 - core index']
  #allocation1 [shape = 'u32[72,128]{1,0:T(1,128)}', space=vmem, size = 0x9000, scoped, tag = 'internal scratch']
  #allocation2 [shape = 'f32[16,128]{1,0:T(8,128)}', space=vmem, size = 0x2000, scoped, tag = 'scratch operand']
  %s0 = inlined_call_operand.vmem [shape: bf16[16,128], index: 0, kind: input, shape index: {}]
  %s1 = inlined_call_operand.vmem [shape: bf16[512,128], index: 1, kind: input, shape index: {}]
  %s2 = inlined_call_operand.vmem [shape: bf16[512,128], index: 2, kind: input, shape index: {}]
  %s3 = inlined_call_operand.vmem [shape: bf16[128,512], index: 3, kind: input, shape index: {}]
  %s4 = inlined_call_operand.hbm [shape: f32[16,128], index: 4, kind: output, shape index: {}]
  %s5 = sld [smem:[#allocation0]]
  $region34: #{feed_forward.1} parent=0
    _
  %s7 = ssub.s32 1, %s5
  %s8 = scalar_select 0, %s7, %s5
  $region1: #{feed_forward.1} parent=0
    #allocation3 [shape = 'u8[8192]{0}', space=vmem, size = 0x2000, scoped, tag = 'output window, operand 0, single buffered']
    #allocation4 [shape = 's32[1]{0}', space=sflag, size = 0x4, scoped, tag = 'scoped memory for feed_forward.1']
    %9 = vsyncpa [#allocation4], 0
    // Predicated region
    $region2: #{feed_forward.1} parent=1 // pred_check
      _
    $region3: #{feed_forward.1} parent=1 // pred_check_branch
      %11 = sbr.rel (0) target = $region5
    $region4: #{feed_forward.1} parent=1 // pred_region
      _
    $region5: #{feed_forward.1} parent=1 // pred_fallthru
      _
    // Predicated region
    $region6: #{feed_forward.1} parent=1 // pred_check
      _
    $region7: #{feed_forward.1} parent=1 // pred_check_branch
      %13 = sbr.rel (0) target = $region9
    $region8: #{feed_forward.1} parent=1 // pred_region
      _
    $region9: #{feed_forward.1} parent=1 // pred_fallthru
      _
    // Predicated region
    $region10: #{feed_forward.1} parent=1 // pred_check
      _
    $region11: #{feed_forward.1} parent=1 // pred_check_branch
      %15 = sbr.rel (0) target = $region13
    $region12: #{feed_forward.1} parent=1 // pred_region
      _
    $region13: #{feed_forward.1} parent=1 // pred_fallthru
      _
    // Predicated region
    $region14: #{feed_forward.1} parent=1 // pred_check
      _
    $region15: #{feed_forward.1} parent=1 // pred_check_branch
      %17 = sbr.rel (0) target = $region17
    $region16: #{feed_forward.1} parent=1 // pred_region
      _
    $region17: #{feed_forward.1} parent=1 // pred_fallthru
      _
    %p18 = scmp.eq.s32.totalorder 0, 0
    // Predicated region
    $region18: #{feed_forward.1} parent=1 // pred_check
      %p19 = pneg %p18
    $region19: #{feed_forward.1} parent=1 // pred_check_branch
      %21 = sbr.rel (%p19) target = $region21
    $region20: #{feed_forward.1} parent=1 // pred_region
      %22 = vst [vmem:[#allocation2] sm:$0xff] 0.0
      %23 = vst [vmem:[#allocation2 + $0x8] sm:$0xff] 0.0
    $region21: #{feed_forward.1} parent=1 // pred_fallthru
      _
    %v24 = vld [vmem:[%s0] sm:$0xf]
    %v25 = vld [vmem:[%s0 + $0x4] sm:$0xf]
    %v26 = vld [vmem:[%s1] sm:$0xf]
    %v27 = vld [vmem:[%s1 + $0x4] sm:$0xf]
    %v28 = vld [vmem:[%s1 + $0x8] sm:$0xf]
    %v29 = vld [vmem:[%s1 + $0xc] sm:$0xf]
    %v30 = vld [vmem:[%s1 + $0x10] sm:$0xf]
    %v31 = vld [vmem:[%s1 + $0x14] sm:$0xf]
    %v32 = vld [vmem:[%s1 + $0x18] sm:$0xf]
    %v33 = vld [vmem:[%s1 + $0x1c] sm:$0xf]
    %v34 = vld [vmem:[%s1 + $0x20] sm:$0xf]
    %v35 = vld [vmem:[%s1 + $0x24] sm:$0xf]
    %v36 = vld [vmem:[%s1 + $0x28] sm:$0xf]
    %v37 = vld [vmem:[%s1 + $0x2c] sm:$0xf]
    %v38 = vld [vmem:[%s1 + $0x30] sm:$0xf]
    %v39 = vld [vmem:[%s1 + $0x34] sm:$0xf]
    %v40 = vld [vmem:[%s1 + $0x38] sm:$0xf]
    %v41 = vld [vmem:[%s1 + $0x3c] sm:$0xf]
    %v42 = vld [vmem:[%s1 + $0x40] sm:$0xf]
    %v43 = vld [vmem:[%s1 + $0x44] sm:$0xf]
    %v44 = vld [vmem:[%s1 + $0x48] sm:$0xf]
    %v45 = vld [vmem:[%s1 + $0x4c] sm:$0xf]
    %v46 = vld [vmem:[%s1 + $0x50] sm:$0xf]
    %v47 = vld [vmem:[%s1 + $0x54] sm:$0xf]
    %v48 = vld [vmem:[%s1 + $0x58] sm:$0xf]
    %v49 = vld [vmem:[%s1 + $0x5c] sm:$0xf]
    %v50 = vld [vmem:[%s1 + $0x60] sm:$0xf]
    %v51 = vld [vmem:[%s1 + $0x64] sm:$0xf]
    %v52 = vld [vmem:[%s1 + $0x68] sm:$0xf]
    %v53 = vld [vmem:[%s1 + $0x6c] sm:$0xf]
    %v54 = vld [vmem:[%s1 + $0x70] sm:$0xf]
    %v55 = vld [vmem:[%s1 + $0x74] sm:$0xf]
    %v56 = vld [vmem:[%s1 + $0x78] sm:$0xf]
    %v57 = vld [vmem:[%s1 + $0x7c] sm:$0xf]
    %v58 = vld [vmem:[%s1 + $0x80] sm:$0xf]
    %v59 = vld [vmem:[%s1 + $0x84] sm:$0xf]
    %v60 = vld [vmem:[%s1 + $0x88] sm:$0xf]
    %v61 = vld [vmem:[%s1 + $0x8c] sm:$0xf]
    %v62 = vld [vmem:[%s1 + $0x90] sm:$0xf]
    %v63 = vld [vmem:[%s1 + $0x94] sm:$0xf]
    %v64 = vld [vmem:[%s1 + $0x98] sm:$0xf]
    %v65 = vld [vmem:[%s1 + $0x9c] sm:$0xf]
    %v66 = vld [vmem:[%s1 + $0xa0] sm:$0xf]
    %v67 = vld [vmem:[%s1 + $0xa4] sm:$0xf]
    %v68 = vld [vmem:[%s1 + $0xa8] sm:$0xf]
    %v69 = vld [vmem:[%s1 + $0xac] sm:$0xf]
    %v70 = vld [vmem:[%s1 + $0xb0] sm:$0xf]
    %v71 = vld [vmem:[%s1 + $0xb4] sm:$0xf]
    %v72 = vld [vmem:[%s1 + $0xb8] sm:$0xf]
    %v73 = vld [vmem:[%s1 + $0xbc] sm:$0xf]
    %v74 = vld [vmem:[%s1 + $0xc0] sm:$0xf]
    %v75 = vld [vmem:[%s1 + $0xc4] sm:$0xf]
    %v76 = vld [vmem:[%s1 + $0xc8] sm:$0xf]
    %v77 = vld [vmem:[%s1 + $0xcc] sm:$0xf]
    %v78 = vld [vmem:[%s1 + $0xd0] sm:$0xf]
    %v79 = vld [vmem:[%s1 + $0xd4] sm:$0xf]
    %v80 = vld [vmem:[%s1 + $0xd8] sm:$0xf]
    %v81 = vld [vmem:[%s1 + $0xdc] sm:$0xf]
    %v82 = vld [vmem:[%s1 + $0xe0] sm:$0xf]
    %v83 = vld [vmem:[%s1 + $0xe4] sm:$0xf]
    %v84 = vld [vmem:[%s1 + $0xe8] sm:$0xf]
    %v85 = vld [vmem:[%s1 + $0xec] sm:$0xf]
    %v86 = vld [vmem:[%s1 + $0xf0] sm:$0xf]
    %v87 = vld [vmem:[%s1 + $0xf4] sm:$0xf]
    %v88 = vld [vmem:[%s1 + $0xf8] sm:$0xf]
    %v89 = vld [vmem:[%s1 + $0xfc] sm:$0xf]
    %v92 = vunpack.c.l.b16 %v24
    %v93 = vunpack.c.l.b16 %v25
    %v94 = vpack.c.b16 %v93, %v92
    %v160 = vunpack.c.l.b16 %v26
    %v161 = vunpack.c.l.b16 %v27
    %v162 = vunpack.c.l.b16 %v28
    %v163 = vunpack.c.l.b16 %v29
    %v164 = vunpack.c.l.b16 %v30
    %v165 = vunpack.c.l.b16 %v31
    %v166 = vunpack.c.l.b16 %v32
    %v167 = vunpack.c.l.b16 %v33
    %v168 = vunpack.c.l.b16 %v34
    %v169 = vunpack.c.l.b16 %v35
    %v170 = vunpack.c.l.b16 %v36
    %v171 = vunpack.c.l.b16 %v37
    %v172 = vunpack.c.l.b16 %v38
    %v173 = vunpack.c.l.b16 %v39
    %v174 = vunpack.c.l.b16 %v40
    %v175 = vunpack.c.l.b16 %v41
    %v176 = vunpack.c.l.b16 %v42
    %v177 = vunpack.c.l.b16 %v43
    %v178 = vunpack.c.l.b16 %v44
    %v179 = vunpack.c.l.b16 %v45
    %v180 = vunpack.c.l.b16 %v46
    %v181 = vunpack.c.l.b16 %v47
    %v182 = vunpack.c.l.b16 %v48
    %v183 = vunpack.c.l.b16 %v49
    %v184 = vunpack.c.l.b16 %v50
    %v185 = vunpack.c.l.b16 %v51
    %v186 = vunpack.c.l.b16 %v52
    %v187 = vunpack.c.l.b16 %v53
    %v188 = vunpack.c.l.b16 %v54
    %v189 = vunpack.c.l.b16 %v55
    %v190 = vunpack.c.l.b16 %v56
    %v191 = vunpack.c.l.b16 %v57
    %v192 = vunpack.c.l.b16 %v58
    %v193 = vunpack.c.l.b16 %v59
    %v194 = vunpack.c.l.b16 %v60
    %v195 = vunpack.c.l.b16 %v61
    %v196 = vunpack.c.l.b16 %v62
    %v197 = vunpack.c.l.b16 %v63
    %v198 = vunpack.c.l.b16 %v64
    %v199 = vunpack.c.l.b16 %v65
    %v200 = vunpack.c.l.b16 %v66
    %v201 = vunpack.c.l.b16 %v67
    %v202 = vunpack.c.l.b16 %v68
    %v203 = vunpack.c.l.b16 %v69
    %v204 = vunpack.c.l.b16 %v70
    %v205 = vunpack.c.l.b16 %v71
    %v206 = vunpack.c.l.b16 %v72
    %v207 = vunpack.c.l.b16 %v73
    %v208 = vunpack.c.l.b16 %v74
    %v209 = vunpack.c.l.b16 %v75
    %v210 = vunpack.c.l.b16 %v76
    %v211 = vunpack.c.l.b16 %v77
    %v212 = vunpack.c.l.b16 %v78
    %v213 = vunpack.c.l.b16 %v79
    %v214 = vunpack.c.l.b16 %v80
    %v215 = vunpack.c.l.b16 %v81
    %v216 = vunpack.c.l.b16 %v82
    %v217 = vunpack.c.l.b16 %v83
    %v218 = vunpack.c.l.b16 %v84
    %v219 = vunpack.c.l.b16 %v85
    %v220 = vunpack.c.l.b16 %v86
    %v221 = vunpack.c.l.b16 %v87
    %v222 = vunpack.c.l.b16 %v88
    %v223 = vunpack.c.l.b16 %v89
    %v224 = vpack.c.b16 %v161, %v160
    %v225 = vpack.c.b16 %v163, %v162
    %v226 = vpack.c.b16 %v165, %v164
    %v227 = vpack.c.b16 %v167, %v166
    %v228 = vpack.c.b16 %v169, %v168
    %v229 = vpack.c.b16 %v171, %v170
    %v230 = vpack.c.b16 %v173, %v172
    %v231 = vpack.c.b16 %v175, %v174
    %v232 = vpack.c.b16 %v177, %v176
    %v233 = vpack.c.b16 %v179, %v178
    %v234 = vpack.c.b16 %v181, %v180
    %v235 = vpack.c.b16 %v183, %v182
    %v236 = vpack.c.b16 %v185, %v184
    %v237 = vpack.c.b16 %v187, %v186
    %v238 = vpack.c.b16 %v189, %v188
    %v239 = vpack.c.b16 %v191, %v190
    %v240 = vpack.c.b16 %v193, %v192
    %v241 = vpack.c.b16 %v195, %v194
    %v242 = vpack.c.b16 %v197, %v196
    %v243 = vpack.c.b16 %v199, %v198
    %v244 = vpack.c.b16 %v201, %v200
    %v245 = vpack.c.b16 %v203, %v202
    %v246 = vpack.c.b16 %v205, %v204
    %v247 = vpack.c.b16 %v207, %v206
    %v248 = vpack.c.b16 %v209, %v208
    %v249 = vpack.c.b16 %v211, %v210
    %v250 = vpack.c.b16 %v213, %v212
    %v251 = vpack.c.b16 %v215, %v214
    %v252 = vpack.c.b16 %v217, %v216
    %v253 = vpack.c.b16 %v219, %v218
    %v254 = vpack.c.b16 %v221, %v220
    %v255 = vpack.c.b16 %v223, %v222
    %288 = vmatpush.bf16.xpose.msra.mxu0 %v231
    %289 = vmatpush.bf16.xpose.msra.mxu0 %v230
    %290 = vmatpush.bf16.xpose.msra.mxu0 %v229
    %291 = vmatpush.bf16.xpose.msra.mxu0 %v228
    %292 = vmatpush.bf16.xpose.msra.mxu0 %v227
    %293 = vmatpush.bf16.xpose.msra.mxu0 %v226
    %294 = vmatpush.bf16.xpose.msra.mxu0 %v225
    %295 = vmatpush.bf16.xpose.msra.mxu0 %v224
    %296 = vmatmul.bf16.gmra.mxu0 %v94
    %v297 = vpop.f32.mrf.mxu0
    %v298 = vadd.f32 0.0, %v297
    %v299 = vpop.f32.mrf.mxu0
    %v300 = vadd.f32 0.0, %v299
    %301 = vdwg.mxu0
    %302 = vmatpush.bf16.xpose.msra.mxu0 %v239
    %303 = vmatpush.bf16.xpose.msra.mxu0 %v238
    %304 = vmatpush.bf16.xpose.msra.mxu0 %v237
    %305 = vmatpush.bf16.xpose.msra.mxu0 %v236
    %306 = vmatpush.bf16.xpose.msra.mxu0 %v235
    %307 = vmatpush.bf16.xpose.msra.mxu0 %v234
    %308 = vmatpush.bf16.xpose.msra.mxu0 %v233
    %309 = vmatpush.bf16.xpose.msra.mxu0 %v232
    %310 = vmatmul.bf16.gmra.mxu0 %v94
    %v311 = vpop.f32.mrf.mxu0
    %v312 = vadd.f32 0.0, %v311
    %v313 = vpop.f32.mrf.mxu0
    %v314 = vadd.f32 0.0, %v313
    %315 = vdwg.mxu0
    %316 = vmatpush.bf16.xpose.msra.mxu0 %v247
    %317 = vmatpush.bf16.xpose.msra.mxu0 %v246
    %318 = vmatpush.bf16.xpose.msra.mxu0 %v245
    %319 = vmatpush.bf16.xpose.msra.mxu0 %v244
    %320 = vmatpush.bf16.xpose.msra.mxu0 %v243
    %321 = vmatpush.bf16.xpose.msra.mxu0 %v242
    %322 = vmatpush.bf16.xpose.msra.mxu0 %v241
    %323 = vmatpush.bf16.xpose.msra.mxu0 %v240
    %324 = vmatmul.bf16.gmra.mxu0 %v94
    %v325 = vpop.f32.mrf.mxu0
    %v326 = vadd.f32 0.0, %v325
    %v327 = vpop.f32.mrf.mxu0
    %v328 = vadd.f32 0.0, %v327
    %329 = vdwg.mxu0
    %330 = vmatpush.bf16.xpose.msra.mxu0 %v255
    %331 = vmatpush.bf16.xpose.msra.mxu0 %v254
    %332 = vmatpush.bf16.xpose.msra.mxu0 %v253
    %333 = vmatpush.bf16.xpose.msra.mxu0 %v252
    %334 = vmatpush.bf16.xpose.msra.mxu0 %v251
    %335 = vmatpush.bf16.xpose.msra.mxu0 %v250
    %336 = vmatpush.bf16.xpose.msra.mxu0 %v249
    %337 = vmatpush.bf16.xpose.msra.mxu0 %v248
    %338 = vmatmul.bf16.gmra.mxu0 %v94
    %v339 = vpop.f32.mrf.mxu0
    %v340 = vadd.f32 0.0, %v339
    %v341 = vpop.f32.mrf.mxu0
    %v342 = vadd.f32 0.0, %v341
    %343 = vdwg.mxu0
    %v344 = vld [vmem:[%s2] sm:$0xf]
    %v345 = vld [vmem:[%s2 + $0x4] sm:$0xf]
    %v346 = vld [vmem:[%s2 + $0x8] sm:$0xf]
    %v347 = vld [vmem:[%s2 + $0xc] sm:$0xf]
    %v348 = vld [vmem:[%s2 + $0x10] sm:$0xf]
    %v349 = vld [vmem:[%s2 + $0x14] sm:$0xf]
    %v350 = vld [vmem:[%s2 + $0x18] sm:$0xf]
    %v351 = vld [vmem:[%s2 + $0x1c] sm:$0xf]
    %v352 = vld [vmem:[%s2 + $0x20] sm:$0xf]
    %v353 = vld [vmem:[%s2 + $0x24] sm:$0xf]
    %v354 = vld [vmem:[%s2 + $0x28] sm:$0xf]
    %v355 = vld [vmem:[%s2 + $0x2c] sm:$0xf]
    %v356 = vld [vmem:[%s2 + $0x30] sm:$0xf]
    %v357 = vld [vmem:[%s2 + $0x34] sm:$0xf]
    %v358 = vld [vmem:[%s2 + $0x38] sm:$0xf]
    %v359 = vld [vmem:[%s2 + $0x3c] sm:$0xf]
    %v360 = vld [vmem:[%s2 + $0x40] sm:$0xf]
    %v361 = vld [vmem:[%s2 + $0x44] sm:$0xf]
    %v362 = vld [vmem:[%s2 + $0x48] sm:$0xf]
    %v363 = vld [vmem:[%s2 + $0x4c] sm:$0xf]
    %v364 = vld [vmem:[%s2 + $0x50] sm:$0xf]
    %v365 = vld [vmem:[%s2 + $0x54] sm:$0xf]
    %v366 = vld [vmem:[%s2 + $0x58] sm:$0xf]
    %v367 = vld [vmem:[%s2 + $0x5c] sm:$0xf]
    %v368 = vld [vmem:[%s2 + $0x60] sm:$0xf]
    %v369 = vld [vmem:[%s2 + $0x64] sm:$0xf]
    %v370 = vld [vmem:[%s2 + $0x68] sm:$0xf]
    %v371 = vld [vmem:[%s2 + $0x6c] sm:$0xf]
    %v372 = vld [vmem:[%s2 + $0x70] sm:$0xf]
    %v373 = vld [vmem:[%s2 + $0x74] sm:$0xf]
    %v374 = vld [vmem:[%s2 + $0x78] sm:$0xf]
    %v375 = vld [vmem:[%s2 + $0x7c] sm:$0xf]
    %v376 = vld [vmem:[%s2 + $0x80] sm:$0xf]
    %v377 = vld [vmem:[%s2 + $0x84] sm:$0xf]
    %v378 = vld [vmem:[%s2 + $0x88] sm:$0xf]
    %v379 = vld [vmem:[%s2 + $0x8c] sm:$0xf]
    %v380 = vld [vmem:[%s2 + $0x90] sm:$0xf]
    %v381 = vld [vmem:[%s2 + $0x94] sm:$0xf]
    %v382 = vld [vmem:[%s2 + $0x98] sm:$0xf]
    %v383 = vld [vmem:[%s2 + $0x9c] sm:$0xf]
    %v384 = vld [vmem:[%s2 + $0xa0] sm:$0xf]
    %v385 = vld [vmem:[%s2 + $0xa4] sm:$0xf]
    %v386 = vld [vmem:[%s2 + $0xa8] sm:$0xf]
    %v387 = vld [vmem:[%s2 + $0xac] sm:$0xf]
    %v388 = vld [vmem:[%s2 + $0xb0] sm:$0xf]
    %v389 = vld [vmem:[%s2 + $0xb4] sm:$0xf]
    %v390 = vld [vmem:[%s2 + $0xb8] sm:$0xf]
    %v391 = vld [vmem:[%s2 + $0xbc] sm:$0xf]
    %v392 = vld [vmem:[%s2 + $0xc0] sm:$0xf]
    %v393 = vld [vmem:[%s2 + $0xc4] sm:$0xf]
    %v394 = vld [vmem:[%s2 + $0xc8] sm:$0xf]
    %v395 = vld [vmem:[%s2 + $0xcc] sm:$0xf]
    %v396 = vld [vmem:[%s2 + $0xd0] sm:$0xf]
    %v397 = vld [vmem:[%s2 + $0xd4] sm:$0xf]
    %v398 = vld [vmem:[%s2 + $0xd8] sm:$0xf]
    %v399 = vld [vmem:[%s2 + $0xdc] sm:$0xf]
    %v400 = vld [vmem:[%s2 + $0xe0] sm:$0xf]
    %v401 = vld [vmem:[%s2 + $0xe4] sm:$0xf]
    %v402 = vld [vmem:[%s2 + $0xe8] sm:$0xf]
    %v403 = vld [vmem:[%s2 + $0xec] sm:$0xf]
    %v404 = vld [vmem:[%s2 + $0xf0] sm:$0xf]
    %v405 = vld [vmem:[%s2 + $0xf4] sm:$0xf]
    %v406 = vld [vmem:[%s2 + $0xf8] sm:$0xf]
    %v407 = vld [vmem:[%s2 + $0xfc] sm:$0xf]
    %v472 = vunpack.c.l.b16 %v344
    %v473 = vunpack.c.l.b16 %v345
    %v474 = vunpack.c.l.b16 %v346
    %v475 = vunpack.c.l.b16 %v347
    %v476 = vunpack.c.l.b16 %v348
    %v477 = vunpack.c.l.b16 %v349
    %v478 = vunpack.c.l.b16 %v350
    %v479 = vunpack.c.l.b16 %v351
    %v480 = vunpack.c.l.b16 %v352
    %v481 = vunpack.c.l.b16 %v353
    %v482 = vunpack.c.l.b16 %v354
    %v483 = vunpack.c.l.b16 %v355
    %v484 = vunpack.c.l.b16 %v356
    %v485 = vunpack.c.l.b16 %v357
    %v486 = vunpack.c.l.b16 %v358
    %v487 = vunpack.c.l.b16 %v359
    %v488 = vunpack.c.l.b16 %v360
    %v489 = vunpack.c.l.b16 %v361
    %v490 = vunpack.c.l.b16 %v362
    %v491 = vunpack.c.l.b16 %v363
    %v492 = vunpack.c.l.b16 %v364
    %v493 = vunpack.c.l.b16 %v365
    %v494 = vunpack.c.l.b16 %v366
    %v495 = vunpack.c.l.b16 %v367
    %v496 = vunpack.c.l.b16 %v368
    %v497 = vunpack.c.l.b16 %v369
    %v498 = vunpack.c.l.b16 %v370
    %v499 = vunpack.c.l.b16 %v371
    %v500 = vunpack.c.l.b16 %v372
    %v501 = vunpack.c.l.b16 %v373
    %v502 = vunpack.c.l.b16 %v374
    %v503 = vunpack.c.l.b16 %v375
    %v504 = vunpack.c.l.b16 %v376
    %v505 = vunpack.c.l.b16 %v377
    %v506 = vunpack.c.l.b16 %v378
    %v507 = vunpack.c.l.b16 %v379
    %v508 = vunpack.c.l.b16 %v380
    %v509 = vunpack.c.l.b16 %v381
    %v510 = vunpack.c.l.b16 %v382
    %v511 = vunpack.c.l.b16 %v383
    %v512 = vunpack.c.l.b16 %v384
    %v513 = vunpack.c.l.b16 %v385
    %v514 = vunpack.c.l.b16 %v386
    %v515 = vunpack.c.l.b16 %v387
    %v516 = vunpack.c.l.b16 %v388
    %v517 = vunpack.c.l.b16 %v389
    %v518 = vunpack.c.l.b16 %v390
    %v519 = vunpack.c.l.b16 %v391
    %v520 = vunpack.c.l.b16 %v392
    %v521 = vunpack.c.l.b16 %v393
    %v522 = vunpack.c.l.b16 %v394
    %v523 = vunpack.c.l.b16 %v395
    %v524 = vunpack.c.l.b16 %v396
    %v525 = vunpack.c.l.b16 %v397
    %v526 = vunpack.c.l.b16 %v398
    %v527 = vunpack.c.l.b16 %v399
    %v528 = vunpack.c.l.b16 %v400
    %v529 = vunpack.c.l.b16 %v401
    %v530 = vunpack.c.l.b16 %v402
    %v531 = vunpack.c.l.b16 %v403
    %v532 = vunpack.c.l.b16 %v404
    %v533 = vunpack.c.l.b16 %v405
    %v534 = vunpack.c.l.b16 %v406
    %v535 = vunpack.c.l.b16 %v407
    %v536 = vpack.c.b16 %v473, %v472
    %v537 = vpack.c.b16 %v475, %v474
    %v538 = vpack.c.b16 %v477, %v476
    %v539 = vpack.c.b16 %v479, %v478
    %v540 = vpack.c.b16 %v481, %v480
    %v541 = vpack.c.b16 %v483, %v482
    %v542 = vpack.c.b16 %v485, %v484
    %v543 = vpack.c.b16 %v487, %v486
    %v544 = vpack.c.b16 %v489, %v488
    %v545 = vpack.c.b16 %v491, %v490
    %v546 = vpack.c.b16 %v493, %v492
    %v547 = vpack.c.b16 %v495, %v494
    %v548 = vpack.c.b16 %v497, %v496
    %v549 = vpack.c.b16 %v499, %v498
    %v550 = vpack.c.b16 %v501, %v500
    %v551 = vpack.c.b16 %v503, %v502
    %v552 = vpack.c.b16 %v505, %v504
    %v553 = vpack.c.b16 %v507, %v506
    %v554 = vpack.c.b16 %v509, %v508
    %v555 = vpack.c.b16 %v511, %v510
    %v556 = vpack.c.b16 %v513, %v512
    %v557 = vpack.c.b16 %v515, %v514
    %v558 = vpack.c.b16 %v517, %v516
    %v559 = vpack.c.b16 %v519, %v518
    %v560 = vpack.c.b16 %v521, %v520
    %v561 = vpack.c.b16 %v523, %v522
    %v562 = vpack.c.b16 %v525, %v524
    %v563 = vpack.c.b16 %v527, %v526
    %v564 = vpack.c.b16 %v529, %v528
    %v565 = vpack.c.b16 %v531, %v530
    %v566 = vpack.c.b16 %v533, %v532
    %v567 = vpack.c.b16 %v535, %v534
    %600 = vmatpush.bf16.xpose.msra.mxu0 %v543
    %601 = vmatpush.bf16.xpose.msra.mxu0 %v542
    %602 = vmatpush.bf16.xpose.msra.mxu0 %v541
    %603 = vmatpush.bf16.xpose.msra.mxu0 %v540
    %604 = vmatpush.bf16.xpose.msra.mxu0 %v539
    %605 = vmatpush.bf16.xpose.msra.mxu0 %v538
    %606 = vmatpush.bf16.xpose.msra.mxu0 %v537
    %607 = vmatpush.bf16.xpose.msra.mxu0 %v536
    %608 = vmatmul.bf16.gmra.mxu0 %v94
    %v609 = vpop.f32.mrf.mxu0
    %v610 = vadd.f32 0.0, %v609
    %v611 = vpop.f32.mrf.mxu0
    %v612 = vadd.f32 0.0, %v611
    %613 = vdwg.mxu0
    %614 = vmatpush.bf16.xpose.msra.mxu0 %v551
    %615 = vmatpush.bf16.xpose.msra.mxu0 %v550
    %616 = vmatpush.bf16.xpose.msra.mxu0 %v549
    %617 = vmatpush.bf16.xpose.msra.mxu0 %v548
    %618 = vmatpush.bf16.xpose.msra.mxu0 %v547
    %619 = vmatpush.bf16.xpose.msra.mxu0 %v546
    %620 = vmatpush.bf16.xpose.msra.mxu0 %v545
    %621 = vmatpush.bf16.xpose.msra.mxu0 %v544
    %622 = vmatmul.bf16.gmra.mxu0 %v94
    %v623 = vpop.f32.mrf.mxu0
    %v624 = vadd.f32 0.0, %v623
    %v625 = vpop.f32.mrf.mxu0
    %v626 = vadd.f32 0.0, %v625
    %627 = vdwg.mxu0
    %628 = vmatpush.bf16.xpose.msra.mxu0 %v559
    %629 = vmatpush.bf16.xpose.msra.mxu0 %v558
    %630 = vmatpush.bf16.xpose.msra.mxu0 %v557
    %631 = vmatpush.bf16.xpose.msra.mxu0 %v556
    %632 = vmatpush.bf16.xpose.msra.mxu0 %v555
    %633 = vmatpush.bf16.xpose.msra.mxu0 %v554
    %634 = vmatpush.bf16.xpose.msra.mxu0 %v553
    %635 = vmatpush.bf16.xpose.msra.mxu0 %v552
    %636 = vmatmul.bf16.gmra.mxu0 %v94
    %v637 = vpop.f32.mrf.mxu0
    %v638 = vadd.f32 0.0, %v637
    %v639 = vpop.f32.mrf.mxu0
    %v640 = vadd.f32 0.0, %v639
    %641 = vdwg.mxu0
    %642 = vmatpush.bf16.xpose.msra.mxu0 %v567
    %643 = vmatpush.bf16.xpose.msra.mxu0 %v566
    %644 = vmatpush.bf16.xpose.msra.mxu0 %v565
    %645 = vmatpush.bf16.xpose.msra.mxu0 %v564
    %646 = vmatpush.bf16.xpose.msra.mxu0 %v563
    %647 = vmatpush.bf16.xpose.msra.mxu0 %v562
    %648 = vmatpush.bf16.xpose.msra.mxu0 %v561
    %649 = vmatpush.bf16.xpose.msra.mxu0 %v560
    %650 = vmatmul.bf16.gmra.mxu0 %v94
    %v651 = vpop.f32.mrf.mxu0
    %v652 = vadd.f32 0.0, %v651
    %v653 = vpop.f32.mrf.mxu0
    %v654 = vadd.f32 0.0, %v653
    %655 = vdwg.mxu0
    %v656 = vxor.u32 %v298, 2147483648
    %v657 = vxor.u32 %v312, 2147483648
    %v658 = vxor.u32 %v326, 2147483648
    %v659 = vxor.u32 %v340, 2147483648
    %v660 = vxor.u32 %v300, 2147483648
    %v661 = vxor.u32 %v314, 2147483648
    %v662 = vxor.u32 %v328, 2147483648
    %v663 = vxor.u32 %v342, 2147483648
    %v664 = vmul.f32 %v656, 1.442695
    %v665 = vpow.pop %v664
    %v666 = vmul.f32 %v657, 1.442695
    %v667 = vpow.pop %v666
    %v668 = vmul.f32 %v658, 1.442695
    %v669 = vpow.pop %v668
    %v670 = vmul.f32 %v659, 1.442695
    %v671 = vpow.pop %v670
    %v672 = vmul.f32 %v660, 1.442695
    %v673 = vpow.pop %v672
    %v674 = vmul.f32 %v661, 1.442695
    %v675 = vpow.pop %v674
    %v676 = vmul.f32 %v662, 1.442695
    %v677 = vpow.pop %v676
    %v678 = vmul.f32 %v663, 1.442695
    %v679 = vpow.pop %v678
    %v680 = vadd.f32 %v665, 1.0
    %v681 = vadd.f32 %v667, 1.0
    %v682 = vadd.f32 %v669, 1.0
    %v683 = vadd.f32 %v671, 1.0
    %v684 = vadd.f32 %v673, 1.0
    %v685 = vadd.f32 %v675, 1.0
    %v686 = vadd.f32 %v677, 1.0
    %v687 = vadd.f32 %v679, 1.0
    %v688 = vrcp.pop %v680
    %v689 = vmul.f32 %v680, %v688
    %v690 = vsub.f32 1.0, %v689
    %v691 = vmul.f32 %v688, %v690
    %v692 = vadd.f32 %v688, %v691
    %vm693 = vweird.f32 %v680
    %vm694 = vweird.f32 %v688
    %vm695 = vmor %vm693, %vm694
    %v696 = vsel %vm695, %v688, %v692
    %v697 = vand.u32 2147483647, %v680
    %vm698 = vcmp.eq.f32.partialorder %v697, 8.507059e+37
    %v699 = vand.u32 %v680, 2147483648
    %v700 = vor.u32 1.1754944e-38, %v699
    %v701 = vsel %vm698, %v700, %v696
    %v702 = vmul.f32 1.0, %v701
    %v703 = vrcp.pop %v681
    %v704 = vmul.f32 %v681, %v703
    %v705 = vsub.f32 1.0, %v704
    %v706 = vmul.f32 %v703, %v705
    %v707 = vadd.f32 %v703, %v706
    %vm708 = vweird.f32 %v681
    %vm709 = vweird.f32 %v703
    %vm710 = vmor %vm708, %vm709
    %v711 = vsel %vm710, %v703, %v707
    %v712 = vand.u32 2147483647, %v681
    %vm713 = vcmp.eq.f32.partialorder %v712, 8.507059e+37
    %v714 = vand.u32 %v681, 2147483648
    %v715 = vor.u32 1.1754944e-38, %v714
    %v716 = vsel %vm713, %v715, %v711
    %v717 = vmul.f32 1.0, %v716
    %v718 = vrcp.pop %v682
    %v719 = vmul.f32 %v682, %v718
    %v720 = vsub.f32 1.0, %v719
    %v721 = vmul.f32 %v718, %v720
    %v722 = vadd.f32 %v718, %v721
    %vm723 = vweird.f32 %v682
    %vm724 = vweird.f32 %v718
    %vm725 = vmor %vm723, %vm724
    %v726 = vsel %vm725, %v718, %v722
    %v727 = vand.u32 2147483647, %v682
    %vm728 = vcmp.eq.f32.partialorder %v727, 8.507059e+37
    %v729 = vand.u32 %v682, 2147483648
    %v730 = vor.u32 1.1754944e-38, %v729
    %v731 = vsel %vm728, %v730, %v726
    %v732 = vmul.f32 1.0, %v731
    %v733 = vrcp.pop %v683
    %v734 = vmul.f32 %v683, %v733
    %v735 = vsub.f32 1.0, %v734
    %v736 = vmul.f32 %v733, %v735
    %v737 = vadd.f32 %v733, %v736
    %vm738 = vweird.f32 %v683
    %vm739 = vweird.f32 %v733
    %vm740 = vmor %vm738, %vm739
    %v741 = vsel %vm740, %v733, %v737
    %v742 = vand.u32 2147483647, %v683
    %vm743 = vcmp.eq.f32.partialorder %v742, 8.507059e+37
    %v744 = vand.u32 %v683, 2147483648
    %v745 = vor.u32 1.1754944e-38, %v744
    %v746 = vsel %vm743, %v745, %v741
    %v747 = vmul.f32 1.0, %v746
    %v748 = vrcp.pop %v684
    %v749 = vmul.f32 %v684, %v748
    %v750 = vsub.f32 1.0, %v749
    %v751 = vmul.f32 %v748, %v750
    %v752 = vadd.f32 %v748, %v751
    %vm753 = vweird.f32 %v684
    %vm754 = vweird.f32 %v748
    %vm755 = vmor %vm753, %vm754
    %v756 = vsel %vm755, %v748, %v752
    %v757 = vand.u32 2147483647, %v684
    %vm758 = vcmp.eq.f32.partialorder %v757, 8.507059e+37
    %v759 = vand.u32 %v684, 2147483648
    %v760 = vor.u32 1.1754944e-38, %v759
    %v761 = vsel %vm758, %v760, %v756
    %v762 = vmul.f32 1.0, %v761
    %v763 = vrcp.pop %v685
    %v764 = vmul.f32 %v685, %v763
    %v765 = vsub.f32 1.0, %v764
    %v766 = vmul.f32 %v763, %v765
    %v767 = vadd.f32 %v763, %v766
    %vm768 = vweird.f32 %v685
    %vm769 = vweird.f32 %v763
    %vm770 = vmor %vm768, %vm769
    %v771 = vsel %vm770, %v763, %v767
    %v772 = vand.u32 2147483647, %v685
    %vm773 = vcmp.eq.f32.partialorder %v772, 8.507059e+37
    %v774 = vand.u32 %v685, 2147483648
    %v775 = vor.u32 1.1754944e-38, %v774
    %v776 = vsel %vm773, %v775, %v771
    %v777 = vmul.f32 1.0, %v776
    %v778 = vrcp.pop %v686
    %v779 = vmul.f32 %v686, %v778
    %v780 = vsub.f32 1.0, %v779
    %v781 = vmul.f32 %v778, %v780
    %v782 = vadd.f32 %v778, %v781
    %vm783 = vweird.f32 %v686
    %vm784 = vweird.f32 %v778
    %vm785 = vmor %vm783, %vm784
    %v786 = vsel %vm785, %v778, %v782
    %v787 = vand.u32 2147483647, %v686
    %vm788 = vcmp.eq.f32.partialorder %v787, 8.507059e+37
    %v789 = vand.u32 %v686, 2147483648
    %v790 = vor.u32 1.1754944e-38, %v789
    %v791 = vsel %vm788, %v790, %v786
    %v792 = vmul.f32 1.0, %v791
    %v793 = vrcp.pop %v687
    %v794 = vmul.f32 %v687, %v793
    %v795 = vsub.f32 1.0, %v794
    %v796 = vmul.f32 %v793, %v795
    %v797 = vadd.f32 %v793, %v796
    %vm798 = vweird.f32 %v687
    %vm799 = vweird.f32 %v793
    %vm800 = vmor %vm798, %vm799
    %v801 = vsel %vm800, %v793, %v797
    %v802 = vand.u32 2147483647, %v687
    %vm803 = vcmp.eq.f32.partialorder %v802, 8.507059e+37
    %v804 = vand.u32 %v687, 2147483648
    %v805 = vor.u32 1.1754944e-38, %v804
    %v806 = vsel %vm803, %v805, %v801
    %v807 = vmul.f32 1.0, %v806
    %v808 = vmul.f32 %v298, %v702
    %v809 = vmul.f32 %v312, %v717
    %v810 = vmul.f32 %v326, %v732
    %v811 = vmul.f32 %v340, %v747
    %v812 = vmul.f32 %v300, %v762
    %v813 = vmul.f32 %v314, %v777
    %v814 = vmul.f32 %v328, %v792
    %v815 = vmul.f32 %v342, %v807
    %v816 = vmul.f32 %v808, %v610
    %v817 = vmul.f32 %v809, %v624
    %v818 = vmul.f32 %v810, %v638
    %v819 = vmul.f32 %v811, %v652
    %v820 = vmul.f32 %v812, %v612
    %v821 = vmul.f32 %v813, %v626
    %v822 = vmul.f32 %v814, %v640
    %v823 = vmul.f32 %v815, %v654
    %v824 = vld [vmem:[#allocation2] sm:$0xff]
    %v825 = vld [vmem:[#allocation2 + $0x8] sm:$0xff]
    %v826 = vpack.c.bf16 %v820, %v816
    %v827 = vpack.c.bf16 %v821, %v817
    %v828 = vpack.c.bf16 %v822, %v818
    %v829 = vpack.c.bf16 %v823, %v819
    %v830 = vld [vmem:[%s3] sm:$0xff]
    %v831 = vld [vmem:[%s3 + $0x8] sm:$0xff]
    %v832 = vld [vmem:[%s3 + $0x10] sm:$0xff]
    %v833 = vld [vmem:[%s3 + $0x18] sm:$0xff]
    %v834 = vld [vmem:[%s3 + $0x20] sm:$0xff]
    %v835 = vld [vmem:[%s3 + $0x28] sm:$0xff]
    %v836 = vld [vmem:[%s3 + $0x30] sm:$0xff]
    %v837 = vld [vmem:[%s3 + $0x38] sm:$0xff]
    %v838 = vld [vmem:[%s3 + $0x40] sm:$0xff]
    %v839 = vld [vmem:[%s3 + $0x48] sm:$0xff]
    %v840 = vld [vmem:[%s3 + $0x50] sm:$0xff]
    %v841 = vld [vmem:[%s3 + $0x58] sm:$0xff]
    %v842 = vld [vmem:[%s3 + $0x60] sm:$0xff]
    %v843 = vld [vmem:[%s3 + $0x68] sm:$0xff]
    %v844 = vld [vmem:[%s3 + $0x70] sm:$0xff]
    %v845 = vld [vmem:[%s3 + $0x78] sm:$0xff]
    %v846 = vld [vmem:[%s3 + $0x80] sm:$0xff]
    %v847 = vld [vmem:[%s3 + $0x88] sm:$0xff]
    %v848 = vld [vmem:[%s3 + $0x90] sm:$0xff]
    %v849 = vld [vmem:[%s3 + $0x98] sm:$0xff]
    %v850 = vld [vmem:[%s3 + $0xa0] sm:$0xff]
    %v851 = vld [vmem:[%s3 + $0xa8] sm:$0xff]
    %v852 = vld [vmem:[%s3 + $0xb0] sm:$0xff]
    %v853 = vld [vmem:[%s3 + $0xb8] sm:$0xff]
    %v854 = vld [vmem:[%s3 + $0xc0] sm:$0xff]
    %v855 = vld [vmem:[%s3 + $0xc8] sm:$0xff]
    %v856 = vld [vmem:[%s3 + $0xd0] sm:$0xff]
    %v857 = vld [vmem:[%s3 + $0xd8] sm:$0xff]
    %v858 = vld [vmem:[%s3 + $0xe0] sm:$0xff]
    %v859 = vld [vmem:[%s3 + $0xe8] sm:$0xff]
    %v860 = vld [vmem:[%s3 + $0xf0] sm:$0xff]
    %v861 = vld [vmem:[%s3 + $0xf8] sm:$0xff]
    %v894 = vunpack.c.l.b16 %v830
    %v895 = vunpack.c.h.b16 %v830
    %v896 = vunpack.c.l.b16 %v831
    %v897 = vunpack.c.h.b16 %v831
    %v898 = vunpack.c.l.b16 %v832
    %v899 = vunpack.c.h.b16 %v832
    %v900 = vunpack.c.l.b16 %v833
    %v901 = vunpack.c.h.b16 %v833
    %v902 = vunpack.c.l.b16 %v834
    %v903 = vunpack.c.h.b16 %v834
    %v904 = vunpack.c.l.b16 %v835
    %v905 = vunpack.c.h.b16 %v835
    %v906 = vunpack.c.l.b16 %v836
    %v907 = vunpack.c.h.b16 %v836
    %v908 = vunpack.c.l.b16 %v837
    %v909 = vunpack.c.h.b16 %v837
    %v910 = vunpack.c.l.b16 %v838
    %v911 = vunpack.c.h.b16 %v838
    %v912 = vunpack.c.l.b16 %v839
    %v913 = vunpack.c.h.b16 %v839
    %v914 = vunpack.c.l.b16 %v840
    %v915 = vunpack.c.h.b16 %v840
    %v916 = vunpack.c.l.b16 %v841
    %v917 = vunpack.c.h.b16 %v841
    %v918 = vunpack.c.l.b16 %v842
    %v919 = vunpack.c.h.b16 %v842
    %v920 = vunpack.c.l.b16 %v843
    %v921 = vunpack.c.h.b16 %v843
    %v922 = vunpack.c.l.b16 %v844
    %v923 = vunpack.c.h.b16 %v844
    %v924 = vunpack.c.l.b16 %v845
    %v925 = vunpack.c.h.b16 %v845
    %v926 = vunpack.c.l.b16 %v846
    %v927 = vunpack.c.h.b16 %v846
    %v928 = vunpack.c.l.b16 %v847
    %v929 = vunpack.c.h.b16 %v847
    %v930 = vunpack.c.l.b16 %v848
    %v931 = vunpack.c.h.b16 %v848
    %v932 = vunpack.c.l.b16 %v849
    %v933 = vunpack.c.h.b16 %v849
    %v934 = vunpack.c.l.b16 %v850
    %v935 = vunpack.c.h.b16 %v850
    %v936 = vunpack.c.l.b16 %v851
    %v937 = vunpack.c.h.b16 %v851
    %v938 = vunpack.c.l.b16 %v852
    %v939 = vunpack.c.h.b16 %v852
    %v940 = vunpack.c.l.b16 %v853
    %v941 = vunpack.c.h.b16 %v853
    %v942 = vunpack.c.l.b16 %v854
    %v943 = vunpack.c.h.b16 %v854
    %v944 = vunpack.c.l.b16 %v855
    %v945 = vunpack.c.h.b16 %v855
    %v946 = vunpack.c.l.b16 %v856
    %v947 = vunpack.c.h.b16 %v856
    %v948 = vunpack.c.l.b16 %v857
    %v949 = vunpack.c.h.b16 %v857
    %v950 = vunpack.c.l.b16 %v858
    %v951 = vunpack.c.h.b16 %v858
    %v952 = vunpack.c.l.b16 %v859
    %v953 = vunpack.c.h.b16 %v859
    %v954 = vunpack.c.l.b16 %v860
    %v955 = vunpack.c.h.b16 %v860
    %v956 = vunpack.c.l.b16 %v861
    %v957 = vunpack.c.h.b16 %v861
    %v958 = vpack.c.b16 %v898, %v894
    %v959 = vpack.c.b16 %v899, %v895
    %v960 = vpack.c.b16 %v900, %v896
    %v961 = vpack.c.b16 %v901, %v897
    %v962 = vpack.c.b16 %v906, %v902
    %v963 = vpack.c.b16 %v907, %v903
    %v964 = vpack.c.b16 %v908, %v904
    %v965 = vpack.c.b16 %v909, %v905
    %v966 = vpack.c.b16 %v914, %v910
    %v967 = vpack.c.b16 %v915, %v911
    %v968 = vpack.c.b16 %v916, %v912
    %v969 = vpack.c.b16 %v917, %v913
    %v970 = vpack.c.b16 %v922, %v918
    %v971 = vpack.c.b16 %v923, %v919
    %v972 = vpack.c.b16 %v924, %v920
    %v973 = vpack.c.b16 %v925, %v921
    %v974 = vpack.c.b16 %v930, %v926
    %v975 = vpack.c.b16 %v931, %v927
    %v976 = vpack.c.b16 %v932, %v928
    %v977 = vpack.c.b16 %v933, %v929
    %v978 = vpack.c.b16 %v938, %v934
    %v979 = vpack.c.b16 %v939, %v935
    %v980 = vpack.c.b16 %v940, %v936
    %v981 = vpack.c.b16 %v941, %v937
    %v982 = vpack.c.b16 %v946, %v942
    %v983 = vpack.c.b16 %v947, %v943
    %v984 = vpack.c.b16 %v948, %v944
    %v985 = vpack.c.b16 %v949, %v945
    %v986 = vpack.c.b16 %v954, %v950
    %v987 = vpack.c.b16 %v955, %v951
    %v988 = vpack.c.b16 %v956, %v952
    %v989 = vpack.c.b16 %v957, %v953
    %1022 = vmatpush.bf16.xpose.msra.mxu0 %v986
    %1023 = vmatpush.bf16.xpose.msra.mxu0 %v982
    %1024 = vmatpush.bf16.xpose.msra.mxu0 %v978
    %1025 = vmatpush.bf16.xpose.msra.mxu0 %v974
    %1026 = vmatpush.bf16.xpose.msra.mxu0 %v970
    %1027 = vmatpush.bf16.xpose.msra.mxu0 %v966
    %1028 = vmatpush.bf16.xpose.msra.mxu0 %v962
    %1029 = vmatpush.bf16.xpose.msra.mxu0 %v958
    %1030 = vmatmul.bf16.gmra.mxu0 %v826
    %v1031 = vpop.f32.mrf.mxu0
    %v1032 = vadd.f32 0.0, %v1031
    %v1033 = vpop.f32.mrf.mxu0
    %v1034 = vadd.f32 0.0, %v1033
    %1035 = vdwg.mxu0
    %1036 = vmatpush.bf16.xpose.msra.mxu0 %v987
    %1037 = vmatpush.bf16.xpose.msra.mxu0 %v983
    %1038 = vmatpush.bf16.xpose.msra.mxu0 %v979
    %1039 = vmatpush.bf16.xpose.msra.mxu0 %v975
    %1040 = vmatpush.bf16.xpose.msra.mxu0 %v971
    %1041 = vmatpush.bf16.xpose.msra.mxu0 %v967
    %1042 = vmatpush.bf16.xpose.msra.mxu0 %v963
    %1043 = vmatpush.bf16.xpose.msra.mxu0 %v959
    %1044 = vmatmul.bf16.gmra.mxu0 %v827
    %v1045 = vpop.f32.mrf.mxu0
    %v1046 = vadd.f32 %v1032, %v1045
    %v1047 = vpop.f32.mrf.mxu0
    %v1048 = vadd.f32 %v1034, %v1047
    %1049 = vdwg.mxu0
    %1050 = vmatpush.bf16.xpose.msra.mxu0 %v988
    %1051 = vmatpush.bf16.xpose.msra.mxu0 %v984
    %1052 = vmatpush.bf16.xpose.msra.mxu0 %v980
    %1053 = vmatpush.bf16.xpose.msra.mxu0 %v976
    %1054 = vmatpush.bf16.xpose.msra.mxu0 %v972
    %1055 = vmatpush.bf16.xpose.msra.mxu0 %v968
    %1056 = vmatpush.bf16.xpose.msra.mxu0 %v964
    %1057 = vmatpush.bf16.xpose.msra.mxu0 %v960
    %1058 = vmatmul.bf16.gmra.mxu0 %v828
    %v1059 = vpop.f32.mrf.mxu0
    %v1060 = vadd.f32 %v1046, %v1059
    %v1061 = vpop.f32.mrf.mxu0
    %v1062 = vadd.f32 %v1048, %v1061
    %1063 = vdwg.mxu0
    %1064 = vmatpush.bf16.xpose.msra.mxu0 %v989
    %1065 = vmatpush.bf16.xpose.msra.mxu0 %v985
    %1066 = vmatpush.bf16.xpose.msra.mxu0 %v981
    %1067 = vmatpush.bf16.xpose.msra.mxu0 %v977
    %1068 = vmatpush.bf16.xpose.msra.mxu0 %v973
    %1069 = vmatpush.bf16.xpose.msra.mxu0 %v969
    %1070 = vmatpush.bf16.xpose.msra.mxu0 %v965
    %1071 = vmatpush.bf16.xpose.msra.mxu0 %v961
    %1072 = vmatmul.bf16.gmra.mxu0 %v829
    %v1073 = vpop.f32.mrf.mxu0
    %v1074 = vadd.f32 %v1060, %v1073
    %v1075 = vpop.f32.mrf.mxu0
    %v1076 = vadd.f32 %v1062, %v1075
    %1077 = vdwg.mxu0
    %v1078 = vadd.f32 %v824, %v1074
    %v1079 = vadd.f32 %v825, %v1076
    %1080 = vst [vmem:[#allocation2] sm:$0xff] %v1078
    %1081 = vst [vmem:[#allocation2 + $0x8] sm:$0xff] %v1079
    // Predicated region
    $region22: #{feed_forward.1} parent=1 // pred_check
      %p1082 = pneg %p18
    $region23: #{feed_forward.1} parent=1 // pred_check_branch
      %1084 = sbr.rel (%p1082) target = $region25
    $region24: #{feed_forward.1} parent=1 // pred_region
      %v1085 = vld [vmem:[#allocation2] sm:$0xff]
      %v1086 = vld [vmem:[#allocation2 + $0x8] sm:$0xff]
      %1087 = vst [vmem:[#allocation3] sm:$0xff] %v1085
      %1088 = vst [vmem:[#allocation3 + $0x8] sm:$0xff] %v1086
    $region25: #{feed_forward.1} parent=1 // pred_fallthru
      _
    // Predicated region
    $region26: #{feed_forward.1} parent=1 // pred_check
      _
    $region27: #{feed_forward.1} parent=1 // pred_check_branch
      %1090 = sbr.rel (0) target = $region29
    $region28: #{feed_forward.1} parent=1 // pred_region
      %1092 = vsyncadd [#allocation4], 0
      %s1093 = sshll.u32 [#allocation3], 4
      %s1094 = int_to_ptr.vmem [resolvable:$true] %s1093
      %s1095 = sshll.u32 %s4, 4
      %s1096 = int_to_ptr.hbm [resolvable:$true] %s1095
      %1101 = dma.vmem_to_hbm [thread:$0]  %s1094, 256, %s1096, [#allocation4], 128, 128, 8
    $region29: #{feed_forward.1} parent=1 // pred_fallthru
      _
    // Predicated region
    $region30: #{feed_forward.1} parent=1 // pred_check
      _
    $region31: #{feed_forward.1} parent=1 // pred_check_branch
      %1103 = sbr.rel (0) target = $region33
    $region32: #{feed_forward.1} parent=1 // pred_region
      %1105 = dma.done [#allocation4], 256
    $region33: #{feed_forward.1} parent=1 // pred_fallthru
      _
    %1106 = vsyncpa [#allocation4], 1

</llo_original>
